<compile_context>
chip_gen: v6e
topology: v6e:2x2x1
jax: 0.10.0
libtpu: 0.0.40
codegen_flags: <defaults>
</compile_context>

<pallas_src>
from functools import partial

import jax
import jax.numpy as jnp
from jax import lax
from jax.experimental import pallas as pl
from jax.experimental.pallas import tpu as pltpu

LN_EPS = 1e-5


def _gated_causal_kernel(x_ref, w_ref, b_ref, g_ref, beta_ref, o_ref):
    """Fused causal-conv (im2col matmul) + GLU + residual + LayerNorm.

    x_ref:    (Bblk, T, F)   F = V*c_out, lane = v*c_out + c (channels zero-padded)
    w_ref:    (Kt*F, 2F)     block-diag conv taps, im2col layout; cols [0:F)=p, [F:2F)=q
    b_ref:    (1, 2F)        conv bias (lane-dense, tiled per vertex)
    g_ref:    (1, F)         LayerNorm gamma, flattened (V, c_out)
    beta_ref: (1, F)         LayerNorm beta
    o_ref:    (Bblk, T_out, F)
    """
    Bblk, T, F = x_ref.shape
    T_out = o_ref.shape[1]
    Kt = w_ref.shape[0] // F

    x = x_ref[...]                                              # (Bblk, T, F)

    # Build the im2col slab (Bblk*T, Kt*F).  Tap k is the whole T-row tile rotated
    # up by k rows (static-shift jnp.roll lowers to slice+concat; pltpu.roll would
    # map the same rotation onto the XLU slot).  Rows >= T_out of each batch are
    # don't-care and never stored, so all row counts / stores stay 8-aligned.
    slabs, residual = [], []
    for bb in range(Bblk):
        xb = x[bb]                                              # (T, F)
        taps = [xb if k == 0 else jnp.roll(xb, -k, axis=0) for k in range(Kt)]
        slabs.append(jnp.concatenate(taps, axis=-1))            # (T, Kt*F)
        residual.append(taps[Kt - 1])                           # (T, F) == x[t+Kt-1]
    xc = slabs[0] if Bblk == 1 else jnp.concatenate(slabs, axis=0)          # (Bblk*T, Kt*F)
    x_in = residual[0] if Bblk == 1 else jnp.concatenate(residual, axis=0)  # (Bblk*T, F)

    # One MXU matmul for all taps and all folded batches: M=Bblk*T, K=Kt*F, N=2F.
    conv = jnp.dot(xc, w_ref[...], preferred_element_type=jnp.float32) + b_ref[...]

    x_p = conv[:, :F]                                           # p half
    x_q = conv[:, F:]                                           # q (gate) half
    # GLU + residual:  y = (x_p + x_in) * sigmoid(x_q) + x_in
    y = (x_p + x_in) * jax.nn.sigmoid(x_q) + x_in               # (Bblk*T, F)

    # LayerNorm over the [n_vertex, c_out] group == the F lanes of each row.
    inv_n = 1.0 / F
    mean = jnp.sum(y, axis=-1, keepdims=True) * inv_n
    centered = y - mean
    var = jnp.sum(centered * centered, axis=-1, keepdims=True) * inv_n
    y = centered * lax.rsqrt(var + LN_EPS) * g_ref[...] + beta_ref[...]

    # Store only the T_out valid rows of each folded batch (row starts bb*T are
    # sublane-aligned; the wrapped garbage rows are dropped here).
    for bb in range(Bblk):
        o_ref[bb] = y[bb * T:bb * T + T_out, :].astype(o_ref.dtype)


def prepare_gated_causal_params(w_conv, b_conv, ln_gamma, ln_beta, *, n_vertex, c_out):
    """One-time packing of PyTorch-layout parameters into the lane-dense,
    block-diagonal im2col form the kernel consumes.  Call once per parameter set
    (NOT per forward pass) and reuse the results."""
    two_c_out, c_in, Kt, kw = w_conv.shape
    assert two_c_out == 2 * c_out and kw == 1
    assert c_in <= c_out, "only the zero-pad Align branch is implemented"
    V = n_vertex
    F = V * c_out

    w_k = jnp.transpose(w_conv[..., 0], (2, 1, 0)).astype(jnp.float32)  # (Kt, c_in, 2*c_out)
    blk = jnp.zeros((Kt, c_out, 2 * c_out), jnp.float32).at[:, :c_in, :].set(w_k)
    eye_v = jnp.eye(V, dtype=jnp.float32)
    # w_big_*[k, v*c_out+ci, w*c_out+o] = (v==w) * W[o(+c_out), ci, k]
    w_big_p = jnp.einsum('vw,kio->kviwo', eye_v, blk[:, :, :c_out]).reshape(Kt, F, F)
    w_big_q = jnp.einsum('vw,kio->kviwo', eye_v, blk[:, :, c_out:]).reshape(Kt, F, F)
    # im2col layout: row k*F + i multiplies xc column k*F + i (= x[t+k, lane i]).
    w_im2col = jnp.concatenate([w_big_p, w_big_q], axis=-1).reshape(Kt * F, 2 * F)

    bias = jnp.concatenate([jnp.tile(b_conv[:c_out], V),
                            jnp.tile(b_conv[c_out:], V)]
                           ).reshape(1, 2 * F).astype(jnp.float32)
    gamma = ln_gamma.reshape(1, F).astype(jnp.float32)
    beta = ln_beta.reshape(1, F).astype(jnp.float32)
    return w_im2col, bias, gamma, beta


@partial(jax.jit, static_argnames=("batch_groups",))
def gated_causal_cnn_lane_dense(x_flat, w_im2col, bias, gamma, beta, *, batch_groups=1):
    """Forward on lane-dense activations.

    x_flat: (B, T, F) with F = n_vertex*c_out, lane = v*c_out + c (channels already
    zero-padded to c_out).  Returns (B, T_out, F) in the same layout so a stack of
    these layers never leaves the lane-dense layout.
    """
    B, T, F = x_flat.shape
    two_F = w_im2col.shape[1]
    Kt = w_im2col.shape[0] // F
    T_out = T - Kt + 1

    groups = max(1, min(int(batch_groups), B))
    while B % groups:
        groups -= 1
    Bblk = B // groups

    return pl.pallas_call(
        _gated_causal_kernel,
        out_shape=jax.ShapeDtypeStruct((B, T_out, F), x_flat.dtype),
        grid=(groups,),
        in_specs=[
            pl.BlockSpec((Bblk, T, F), lambda g: (g, 0, 0)),      # activations
            pl.BlockSpec((Kt * F, two_F), lambda g: (0, 0)),      # im2col conv weights
            pl.BlockSpec((1, two_F), lambda g: (0, 0)),           # conv bias
            pl.BlockSpec((1, F), lambda g: (0, 0)),               # LN gamma
            pl.BlockSpec((1, F), lambda g: (0, 0)),               # LN beta
        ],
        out_specs=pl.BlockSpec((Bblk, T_out, F), lambda g: (g, 0, 0)),
        compiler_params=pltpu.CompilerParams(
            dimension_semantics=("parallel",)),
    )(x_flat, w_im2col, bias, gamma, beta)


def nchw_to_lane_dense(x, c_out):
    """(B, c_in, T, V) NCHW -> lane-dense (B, T, V*c_out) with zero-padded channels.
    Boundary-only layout change; keep activations lane-dense between layers."""
    B, c_in, T, V = x.shape
    x_perm = jnp.transpose(x, (0, 2, 3, 1))                     # (B, T, V, c_in)
    if c_in < c_out:
        x_perm = jnp.pad(x_perm, ((0, 0), (0, 0), (0, 0), (0, c_out - c_in)))
    return x_perm.reshape(B, T, V * c_out)


def lane_dense_to_nchw(y, n_vertex, c_out):
    B, T_out, _ = y.shape
    return jnp.transpose(y.reshape(B, T_out, n_vertex, c_out), (0, 3, 1, 2))


def default_batch_groups(B):
    """>=2-way 'parallel' grid on multi-TensorCore chips (v7x / megacore) so both
    TCs stay busy; single grid step (whole batch folded, weights pushed once) on
    single-TC chips (v5e / v6e)."""
    try:
        kind = jax.devices()[0].device_kind.lower()
    except Exception:
        return 1
    multi_tc = any(tag in kind for tag in ("v7", "v4", "v5p"))
    return 2 if (multi_tc and B % 2 == 0) else 1


def reference_forward(x, w_conv, b_conv, ln_gamma, ln_beta, Kt, c_out):
    """Pure-JAX reference mirroring the PyTorch module (glu branch, eval mode)."""
    B, c_in, T, V = x.shape
    pad = jnp.zeros((B, c_out - c_in, T, V), x.dtype)
    x_in = jnp.concatenate([x, pad], axis=1)[:, :, Kt - 1:, :]   # (B, c_out, T_out, V)
    conv = lax.conv_general_dilated(
        x, w_conv, window_strides=(1, 1), padding="VALID",
        dimension_numbers=("NCHW", "OIHW", "NCHW"))
    conv = conv + b_conv.reshape(1, 2 * c_out, 1, 1)
    x_p, x_q = conv[:, :c_out], conv[:, c_out:]
    y = (x_p + x_in) * jax.nn.sigmoid(x_q) + x_in                # (B, c_out, T_out, V)
    y_perm = jnp.transpose(y, (0, 2, 3, 1))                      # (B, T_out, V, c_out)
    mean = jnp.mean(y_perm, axis=(-2, -1), keepdims=True)
    var = jnp.mean((y_perm - mean) ** 2, axis=(-2, -1), keepdims=True)
    y_ln = (y_perm - mean) / jnp.sqrt(var + LN_EPS) * ln_gamma + ln_beta
    return jnp.transpose(y_ln, (0, 3, 1, 2))


if __name__ == "__main__":
    # Hyperparameters (act_func='glu', enable_gated_act_func=True).
    B, c_in, c_out, Kt, T, V = 2, 4, 8, 3, 16, 16

    key = jax.random.PRNGKey(0)
    kx, kw, kb = jax.random.split(key, 3)

    x = jax.random.normal(kx, (B, c_in, T, V), dtype=jnp.float32)

    # CausalConv2d weight: (2*c_out, c_in, Kt, 1); deterministic kaiming-ish init.
    fan_in = c_in * Kt
    bound = 1.0 / (fan_in ** 0.5)
    w_conv = jax.random.uniform(kw, (2 * c_out, c_in, Kt, 1), jnp.float32,
                                minval=-bound, maxval=bound)
    b_conv = jax.random.uniform(kb, (2 * c_out,), jnp.float32,
                                minval=-bound, maxval=bound)
    # LayerNorm([n_vertex, c_out]) default init.
    ln_gamma = jnp.ones((V, c_out), jnp.float32)
    ln_beta = jnp.zeros((V, c_out), jnp.float32)

    # One-time parameter packing (hoisted out of the per-call forward path).
    params = jax.block_until_ready(
        prepare_gated_causal_params(w_conv, b_conv, ln_gamma, ln_beta,
                                    n_vertex=V, c_out=c_out))

    groups = default_batch_groups(B)

    # Boundary layout change only; a layer stack would stay lane-dense throughout.
    x_ld = nchw_to_lane_dense(x, c_out)
    y_ld = gated_causal_cnn_lane_dense(x_ld, *params, batch_groups=groups)
    out = lane_dense_to_nchw(y_ld, V, c_out)
    out = jax.block_until_ready(out)

    ref = jax.block_until_ready(
        reference_forward(x, w_conv, b_conv, ln_gamma, ln_beta, Kt, c_out))

    assert out.shape == (B, c_out, T - Kt + 1, V), out.shape
    assert jnp.allclose(out, ref, atol=1e-4, rtol=1e-4), \
        float(jnp.max(jnp.abs(out - ref)))

    print("KERNEL_OK")
</pallas_src>

<mosaic_0001>
module attributes {stable_mosaic.version = 11 : i64} {
  func.func @_gated_causal_kernel(%arg0: i32, %arg1: memref<2x16x128xf32, #tpu.memory_space<vmem>>, %arg2: memref<384x256xf32, #tpu.memory_space<vmem>>, %arg3: memref<1x256xf32, #tpu.memory_space<vmem>>, %arg4: memref<1x128xf32, #tpu.memory_space<vmem>>, %arg5: memref<1x128xf32, #tpu.memory_space<vmem>>, %arg6: memref<2x14x128xf32, #tpu.memory_space<vmem>>) attributes {dimension_semantics = [#tpu.dimension_semantics<parallel>], iteration_bounds = array<i64: 1>, scalar_prefetch = 0 : i64, scratch_operands = 0 : i64, tpu.core_type = #tpu.core_type<tc>, window_params = [{transform_indices = @transform_0, window_bounds = array<i64: 2, 16, 128>}, {pipeline_mode = #tpu.pipeline_mode<synchronous>, transform_indices = @transform_1, window_bounds = array<i64: 384, 256>}, {pipeline_mode = #tpu.pipeline_mode<synchronous>, transform_indices = @transform_2, window_bounds = array<i64: 1, 256>}, {pipeline_mode = #tpu.pipeline_mode<synchronous>, transform_indices = @transform_3, window_bounds = array<i64: 1, 128>}, {pipeline_mode = #tpu.pipeline_mode<synchronous>, transform_indices = @transform_4, window_bounds = array<i64: 1, 128>}, {transform_indices = @transform_5, window_bounds = array<i64: 2, 14, 128>}]} {
    %c0 = arith.constant 0 : index
    %c0_0 = arith.constant 0 : index
    %c0_1 = arith.constant 0 : index
    %0 = vector.load %arg1[%c0, %c0_0, %c0_1] : memref<2x16x128xf32, #tpu.memory_space<vmem>>, vector<2x16x128xf32>
    %1 = vector.extract_strided_slice %0 {offsets = [0, 0, 0], sizes = [1, 16, 128], strides = [1, 1, 1]} : vector<2x16x128xf32> to vector<1x16x128xf32>
    %2 = vector.shape_cast %1 : vector<1x16x128xf32> to vector<16x128xf32>
    %3 = vector.extract_strided_slice %2 {offsets = [1, 0], sizes = [15, 128], strides = [1, 1]} : vector<16x128xf32> to vector<15x128xf32>
    %4 = vector.extract_strided_slice %2 {offsets = [0, 0], sizes = [1, 128], strides = [1, 1]} : vector<16x128xf32> to vector<1x128xf32>
    %5 = tpu.concatenate %3, %4 in 0 : vector<15x128xf32>, vector<1x128xf32> -> vector<16x128xf32>
    %6 = vector.extract_strided_slice %2 {offsets = [2, 0], sizes = [14, 128], strides = [1, 1]} : vector<16x128xf32> to vector<14x128xf32>
    %7 = vector.extract_strided_slice %2 {offsets = [0, 0], sizes = [2, 128], strides = [1, 1]} : vector<16x128xf32> to vector<2x128xf32>
    %8 = tpu.concatenate %6, %7 in 0 : vector<14x128xf32>, vector<2x128xf32> -> vector<16x128xf32>
    %9 = tpu.concatenate %2, %5, %8 in 1 : vector<16x128xf32>, vector<16x128xf32>, vector<16x128xf32> -> vector<16x384xf32>
    %10 = vector.extract_strided_slice %0 {offsets = [1, 0, 0], sizes = [1, 16, 128], strides = [1, 1, 1]} : vector<2x16x128xf32> to vector<1x16x128xf32>
    %11 = vector.shape_cast %10 : vector<1x16x128xf32> to vector<16x128xf32>
    %12 = vector.extract_strided_slice %11 {offsets = [1, 0], sizes = [15, 128], strides = [1, 1]} : vector<16x128xf32> to vector<15x128xf32>
    %13 = vector.extract_strided_slice %11 {offsets = [0, 0], sizes = [1, 128], strides = [1, 1]} : vector<16x128xf32> to vector<1x128xf32>
    %14 = tpu.concatenate %12, %13 in 0 : vector<15x128xf32>, vector<1x128xf32> -> vector<16x128xf32>
    %15 = vector.extract_strided_slice %11 {offsets = [2, 0], sizes = [14, 128], strides = [1, 1]} : vector<16x128xf32> to vector<14x128xf32>
    %16 = vector.extract_strided_slice %11 {offsets = [0, 0], sizes = [2, 128], strides = [1, 1]} : vector<16x128xf32> to vector<2x128xf32>
    %17 = tpu.concatenate %15, %16 in 0 : vector<14x128xf32>, vector<2x128xf32> -> vector<16x128xf32>
    %18 = tpu.concatenate %11, %14, %17 in 1 : vector<16x128xf32>, vector<16x128xf32>, vector<16x128xf32> -> vector<16x384xf32>
    %19 = tpu.concatenate %9, %18 in 0 : vector<16x384xf32>, vector<16x384xf32> -> vector<32x384xf32>
    %20 = tpu.concatenate %8, %17 in 0 : vector<16x128xf32>, vector<16x128xf32> -> vector<32x128xf32>
    %c0_2 = arith.constant 0 : index
    %c0_3 = arith.constant 0 : index
    %21 = vector.load %arg2[%c0_2, %c0_3] : memref<384x256xf32, #tpu.memory_space<vmem>>, vector<384x256xf32>
    %cst = arith.constant dense<0.000000e+00> : vector<32x256xf32>
    %22 = tpu.matmul %19, %21, %cst {dimension_numbers = #tpu.dot_dimension_numbers<[1], [0], [0], [1], [0, 0, 1, 1], [], []>} : vector<32x384xf32>, vector<384x256xf32>, vector<32x256xf32> -> vector<32x256xf32>
    %c0_4 = arith.constant 0 : index
    %c0_5 = arith.constant 0 : index
    %23 = vector.load %arg3[%c0_4, %c0_5] : memref<1x256xf32, #tpu.memory_space<vmem>>, vector<1x256xf32>
    %24 = vector.broadcast %23 : vector<1x256xf32> to vector<32x256xf32>
    %25 = arith.addf %22, %24 : vector<32x256xf32>
    %26 = vector.extract_strided_slice %25 {offsets = [0, 0], sizes = [32, 128], strides = [1, 1]} : vector<32x256xf32> to vector<32x128xf32>
    %27 = vector.extract_strided_slice %25 {offsets = [0, 128], sizes = [32, 128], strides = [1, 1]} : vector<32x256xf32> to vector<32x128xf32>
    %28 = arith.addf %26, %20 : vector<32x128xf32>
    %29 = arith.negf %27 : vector<32x128xf32>
    %30 = math.exp %29 : vector<32x128xf32>
    %cst_6 = arith.constant 1.000000e+00 : f32
    %31 = vector.broadcast %cst_6 : f32 to vector<32x128xf32>
    %32 = arith.addf %31, %30 : vector<32x128xf32>
    %33 = arith.divf %31, %32 : vector<32x128xf32>
    %34 = arith.mulf %28, %33 : vector<32x128xf32>
    %35 = arith.addf %34, %20 : vector<32x128xf32>
    %cst_7 = arith.constant dense<0.000000e+00> : vector<32xf32>
    %36 = vector.multi_reduction <add>, %35, %cst_7 [1] : vector<32x128xf32> to vector<32xf32>
    %37 = vector.shape_cast %36 : vector<32xf32> to vector<32x1xf32>
    %cst_8 = arith.constant 7.812500e-03 : f32
    %38 = vector.broadcast %cst_8 : f32 to vector<32x1xf32>
    %39 = arith.mulf %37, %38 : vector<32x1xf32>
    %40 = vector.broadcast %39 : vector<32x1xf32> to vector<32x128xf32>
    %41 = arith.subf %35, %40 : vector<32x128xf32>
    %42 = arith.mulf %41, %41 : vector<32x128xf32>
    %cst_9 = arith.constant dense<0.000000e+00> : vector<32xf32>
    %43 = vector.multi_reduction <add>, %42, %cst_9 [1] : vector<32x128xf32> to vector<32xf32>
    %44 = vector.shape_cast %43 : vector<32xf32> to vector<32x1xf32>
    %cst_10 = arith.constant 7.812500e-03 : f32
    %45 = vector.broadcast %cst_10 : f32 to vector<32x1xf32>
    %46 = arith.mulf %44, %45 : vector<32x1xf32>
    %cst_11 = arith.constant 9.99999974E-6 : f32
    %47 = vector.broadcast %cst_11 : f32 to vector<32x1xf32>
    %48 = arith.addf %46, %47 : vector<32x1xf32>
    %49 = math.rsqrt %48 : vector<32x1xf32>
    %50 = vector.broadcast %49 : vector<32x1xf32> to vector<32x128xf32>
    %51 = arith.mulf %41, %50 : vector<32x128xf32>
    %c0_12 = arith.constant 0 : index
    %c0_13 = arith.constant 0 : index
    %52 = vector.load %arg4[%c0_12, %c0_13] : memref<1x128xf32, #tpu.memory_space<vmem>>, vector<1x128xf32>
    %53 = vector.broadcast %52 : vector<1x128xf32> to vector<32x128xf32>
    %54 = arith.mulf %51, %53 : vector<32x128xf32>
    %c0_14 = arith.constant 0 : index
    %c0_15 = arith.constant 0 : index
    %55 = vector.load %arg5[%c0_14, %c0_15] : memref<1x128xf32, #tpu.memory_space<vmem>>, vector<1x128xf32>
    %56 = vector.broadcast %55 : vector<1x128xf32> to vector<32x128xf32>
    %57 = arith.addf %54, %56 : vector<32x128xf32>
    %58 = vector.extract_strided_slice %57 {offsets = [0, 0], sizes = [14, 128], strides = [1, 1]} : vector<32x128xf32> to vector<14x128xf32>
    %c0_16 = arith.constant 0 : index
    %c0_17 = arith.constant 0 : index
    %c0_18 = arith.constant 0 : index
    %59 = vector.load %arg6[%c0_16, %c0_17, %c0_18] : memref<2x14x128xf32, #tpu.memory_space<vmem>>, vector<1x14x128xf32>
    %60 = vector.shape_cast %59 : vector<1x14x128xf32> to vector<14x128xf32>
    %61 = vector.shape_cast %58 : vector<14x128xf32> to vector<1x14x128xf32>
    tpu.vector_store %arg6[%c0_16, %c0_17, %c0_18], %61 {strides = array<i32>} : memref<2x14x128xf32, #tpu.memory_space<vmem>>, vector<1x14x128xf32>,
    %62 = vector.extract_strided_slice %57 {offsets = [16, 0], sizes = [14, 128], strides = [1, 1]} : vector<32x128xf32> to vector<14x128xf32>
    %c1 = arith.constant 1 : index
    %c0_19 = arith.constant 0 : index
    %c0_20 = arith.constant 0 : index
    %63 = vector.load %arg6[%c1, %c0_19, %c0_20] : memref<2x14x128xf32, #tpu.memory_space<vmem>>, vector<1x14x128xf32>
    %64 = vector.shape_cast %63 : vector<1x14x128xf32> to vector<14x128xf32>
    %65 = vector.shape_cast %62 : vector<14x128xf32> to vector<1x14x128xf32>
    tpu.vector_store %arg6[%c1, %c0_19, %c0_20], %65 {strides = array<i32>} : memref<2x14x128xf32, #tpu.memory_space<vmem>>, vector<1x14x128xf32>,
    return
  }
  func.func @transform_0(%arg0: i32) -> (i32, i32, i32) {
    %c0_i32 = arith.constant 0 : i32
    %c0_i32_0 = arith.constant 0 : i32
    %c0_i32_1 = arith.constant 0 : i32
    return %arg0, %c0_i32, %c0_i32_0 : i32, i32, i32
  }
  func.func @transform_1(%arg0: i32) -> (i32, i32) {
    %c0_i32 = arith.constant 0 : i32
    %c0_i32_0 = arith.constant 0 : i32
    %c0_i32_1 = arith.constant 0 : i32
    return %c0_i32, %c0_i32_0 : i32, i32
  }
  func.func @transform_2(%arg0: i32) -> (i32, i32) {
    %c0_i32 = arith.constant 0 : i32
    %c0_i32_0 = arith.constant 0 : i32
    %c0_i32_1 = arith.constant 0 : i32
    return %c0_i32, %c0_i32_0 : i32, i32
  }
  func.func @transform_3(%arg0: i32) -> (i32, i32) {
    %c0_i32 = arith.constant 0 : i32
    %c0_i32_0 = arith.constant 0 : i32
    %c0_i32_1 = arith.constant 0 : i32
    return %c0_i32, %c0_i32_0 : i32, i32
  }
  func.func @transform_4(%arg0: i32) -> (i32, i32) {
    %c0_i32 = arith.constant 0 : i32
    %c0_i32_0 = arith.constant 0 : i32
    %c0_i32_1 = arith.constant 0 : i32
    return %c0_i32, %c0_i32_0 : i32, i32
  }
  func.func @transform_5(%arg0: i32) -> (i32, i32, i32) {
    %c0_i32 = arith.constant 0 : i32
    %c0_i32_0 = arith.constant 0 : i32
    %c0_i32_1 = arith.constant 0 : i32
    return %arg0, %c0_i32, %c0_i32_0 : i32, i32, i32
  }
}

</mosaic_0001>

<llo_original>
// kernel: gated_causal_cnn_lane_dense.1
$region0: #{gated_causal_cnn_lane_dense.1}
  #allocation0 [shape = 'u32[]', space=smem, size = 0x4, offset = 0x4, fixed_abs, tag = 'smem constant byte address 0x4 - core index']
  #allocation1 [shape = 'u32[144,128]{1,0:T(1,128)}', space=vmem, size = 0x12000, scoped, tag = 'internal scratch']
  %s0 = inlined_call_operand.hbm [shape: f32[2,16,128], index: 0, kind: input, shape index: {}]
  %s1 = inlined_call_operand.hbm [shape: f32[384,256], index: 1, kind: input, shape index: {}]
  %s2 = inlined_call_operand.vmem [shape: f32[1,256], index: 2, kind: input, shape index: {}]
  %s3 = inlined_call_operand.vmem [shape: f32[1,128], index: 3, kind: input, shape index: {}]
  %s4 = inlined_call_operand.vmem [shape: f32[1,128], index: 4, kind: input, shape index: {}]
  %s5 = inlined_call_operand.vmem [shape: f32[2,14,128], index: 5, kind: output, shape index: {}]
  %s6 = sld [smem:[#allocation0]]
  $region38: #{gated_causal_cnn_lane_dense.1} parent=0
    _
  %s8 = ssub.s32 1, %s6
  %s9 = scalar_select 0, %s8, %s6
  $region1: #{gated_causal_cnn_lane_dense.1} parent=0
    #allocation2 [shape = 'u8[16384]{0}', space=vmem, size = 0x4000, scoped, tag = 'input window, operand 0, single buffered']
    #allocation3 [shape = 's32[1]{0}', space=sflag, size = 0x4, scoped, tag = 'scoped memory for gated_causal_cnn_lane_dense.1']
    #allocation4 [shape = 'u8[393216]{0}', space=vmem, size = 0x60000, scoped, tag = 'input window, operand 1, single buffered']
    #allocation5 [shape = 's32[1]{0}', space=sflag, size = 0x4, scoped, tag = 'scoped memory for gated_causal_cnn_lane_dense.1']
    %10 = vsyncpa [#allocation3], 0
    %11 = vsyncpa [#allocation5], 0
    // Predicated region
    $region2: #{gated_causal_cnn_lane_dense.1} parent=1 // pred_check
      _
    $region3: #{gated_causal_cnn_lane_dense.1} parent=1 // pred_check_branch
      %13 = sbr.rel (0) target = $region5
    $region4: #{gated_causal_cnn_lane_dense.1} parent=1 // pred_region
      %s15 = ssub.s32 512, 512
      %16 = vsyncadd [#allocation3], %s15
      %s17 = sshll.u32 [#allocation2], 4
      %s18 = int_to_ptr.vmem [resolvable:$true] %s17
      %23 = dma.hbm_to_vmem [thread:$0]  %s0, 512, %s18, [#allocation3], 128, 128, 8
    $region5: #{gated_causal_cnn_lane_dense.1} parent=1 // pred_fallthru
      _
    // Predicated region
    $region6: #{gated_causal_cnn_lane_dense.1} parent=1 // pred_check
      _
    $region7: #{gated_causal_cnn_lane_dense.1} parent=1 // pred_check_branch
      %25 = sbr.rel (0) target = $region9
    $region8: #{gated_causal_cnn_lane_dense.1} parent=1 // pred_region
      %s27 = ssub.s32 12288, 12288
      %28 = vsyncadd [#allocation5], %s27
      %s29 = sshll.u32 [#allocation4], 4
      %s30 = int_to_ptr.vmem [resolvable:$true] %s29
      %35 = dma.hbm_to_vmem [thread:$0]  %s1, 12288, %s30, [#allocation5], 256, 256, 16
    $region9: #{gated_causal_cnn_lane_dense.1} parent=1 // pred_fallthru
      _
    // Predicated region
    $region10: #{gated_causal_cnn_lane_dense.1} parent=1 // pred_check
      _
    $region11: #{gated_causal_cnn_lane_dense.1} parent=1 // pred_check_branch
      %37 = sbr.rel (0) target = $region13
    $region12: #{gated_causal_cnn_lane_dense.1} parent=1 // pred_region
      _
    $region13: #{gated_causal_cnn_lane_dense.1} parent=1 // pred_fallthru
      _
    // Predicated region
    $region14: #{gated_causal_cnn_lane_dense.1} parent=1 // pred_check
      _
    $region15: #{gated_causal_cnn_lane_dense.1} parent=1 // pred_check_branch
      %39 = sbr.rel (0) target = $region17
    $region16: #{gated_causal_cnn_lane_dense.1} parent=1 // pred_region
      _
    $region17: #{gated_causal_cnn_lane_dense.1} parent=1 // pred_fallthru
      _
    // Predicated region
    $region18: #{gated_causal_cnn_lane_dense.1} parent=1 // pred_check
      _
    $region19: #{gated_causal_cnn_lane_dense.1} parent=1 // pred_check_branch
      %41 = sbr.rel (0) target = $region21
    $region20: #{gated_causal_cnn_lane_dense.1} parent=1 // pred_region
      _
    $region21: #{gated_causal_cnn_lane_dense.1} parent=1 // pred_fallthru
      _
    // Predicated region
    $region22: #{gated_causal_cnn_lane_dense.1} parent=1 // pred_check
      _
    $region23: #{gated_causal_cnn_lane_dense.1} parent=1 // pred_check_branch
      %43 = sbr.rel (0) target = $region25
    $region24: #{gated_causal_cnn_lane_dense.1} parent=1 // pred_region
      %44 = dma.done [#allocation3], 512
    $region25: #{gated_causal_cnn_lane_dense.1} parent=1 // pred_fallthru
      _
    // Predicated region
    $region26: #{gated_causal_cnn_lane_dense.1} parent=1 // pred_check
      _
    $region27: #{gated_causal_cnn_lane_dense.1} parent=1 // pred_check_branch
      %46 = sbr.rel (0) target = $region29
    $region28: #{gated_causal_cnn_lane_dense.1} parent=1 // pred_region
      %47 = dma.done [#allocation5], 12288
    $region29: #{gated_causal_cnn_lane_dense.1} parent=1 // pred_fallthru
      _
    %v48 = vld [vmem:[#allocation2] sm:$0xff]
    %v49 = vld [vmem:[#allocation2 + $0x8] sm:$0xff]
    %v50 = vld [vmem:[#allocation2 + $0x10] sm:$0xff]
    %v51 = vld [vmem:[#allocation2 + $0x18] sm:$0xff]
    %vm54 = vcmask 1046528
    %v55 = vrot.slane %v48, 1
    %v56 = vrot.slane %v49, 1
    %v57 = vsel %vm54, %v55, %v56
    %v61 = vsel %vm54, %v56, %v55
    %vm62 = vcmask 1045504
    %v63 = vrot.slane %v48, 2
    %v64 = vrot.slane %v49, 2
    %v65 = vsel %vm62, %v63, %v64
    %v69 = vsel %vm62, %v64, %v63
    %v72 = vrot.slane %v50, 1
    %v73 = vrot.slane %v51, 1
    %v74 = vsel %vm54, %v72, %v73
    %v78 = vsel %vm54, %v73, %v72
    %v79 = vrot.slane %v50, 2
    %v80 = vrot.slane %v51, 2
    %v81 = vsel %vm62, %v79, %v80
    %v85 = vsel %vm62, %v80, %v79
    %v86 = vld [vmem:[#allocation4] sm:$0xff]
    %v87 = vld [vmem:[#allocation4 + $0x8] sm:$0xff]
    %v88 = vld [vmem:[#allocation4 + $0x10] sm:$0xff]
    %v89 = vld [vmem:[#allocation4 + $0x18] sm:$0xff]
    %v90 = vld [vmem:[#allocation4 + $0x20] sm:$0xff]
    %v91 = vld [vmem:[#allocation4 + $0x28] sm:$0xff]
    %v92 = vld [vmem:[#allocation4 + $0x30] sm:$0xff]
    %v93 = vld [vmem:[#allocation4 + $0x38] sm:$0xff]
    %v94 = vld [vmem:[#allocation4 + $0x40] sm:$0xff]
    %v95 = vld [vmem:[#allocation4 + $0x48] sm:$0xff]
    %v96 = vld [vmem:[#allocation4 + $0x50] sm:$0xff]
    %v97 = vld [vmem:[#allocation4 + $0x58] sm:$0xff]
    %v98 = vld [vmem:[#allocation4 + $0x60] sm:$0xff]
    %v99 = vld [vmem:[#allocation4 + $0x68] sm:$0xff]
    %v100 = vld [vmem:[#allocation4 + $0x70] sm:$0xff]
    %v101 = vld [vmem:[#allocation4 + $0x78] sm:$0xff]
    %v102 = vld [vmem:[#allocation4 + $0x80] sm:$0xff]
    %v103 = vld [vmem:[#allocation4 + $0x88] sm:$0xff]
    %v104 = vld [vmem:[#allocation4 + $0x90] sm:$0xff]
    %v105 = vld [vmem:[#allocation4 + $0x98] sm:$0xff]
    %v106 = vld [vmem:[#allocation4 + $0xa0] sm:$0xff]
    %v107 = vld [vmem:[#allocation4 + $0xa8] sm:$0xff]
    %v108 = vld [vmem:[#allocation4 + $0xb0] sm:$0xff]
    %v109 = vld [vmem:[#allocation4 + $0xb8] sm:$0xff]
    %v110 = vld [vmem:[#allocation4 + $0xc0] sm:$0xff]
    %v111 = vld [vmem:[#allocation4 + $0xc8] sm:$0xff]
    %v112 = vld [vmem:[#allocation4 + $0xd0] sm:$0xff]
    %v113 = vld [vmem:[#allocation4 + $0xd8] sm:$0xff]
    %v114 = vld [vmem:[#allocation4 + $0xe0] sm:$0xff]
    %v115 = vld [vmem:[#allocation4 + $0xe8] sm:$0xff]
    %v116 = vld [vmem:[#allocation4 + $0xf0] sm:$0xff]
    %v117 = vld [vmem:[#allocation4 + $0xf8] sm:$0xff]
    %v118 = vld [vmem:[#allocation4 + $0x100] sm:$0xff]
    %v119 = vld [vmem:[#allocation4 + $0x108] sm:$0xff]
    %v120 = vld [vmem:[#allocation4 + $0x110] sm:$0xff]
    %v121 = vld [vmem:[#allocation4 + $0x118] sm:$0xff]
    %v122 = vld [vmem:[#allocation4 + $0x120] sm:$0xff]
    %v123 = vld [vmem:[#allocation4 + $0x128] sm:$0xff]
    %v124 = vld [vmem:[#allocation4 + $0x130] sm:$0xff]
    %v125 = vld [vmem:[#allocation4 + $0x138] sm:$0xff]
    %v126 = vld [vmem:[#allocation4 + $0x140] sm:$0xff]
    %v127 = vld [vmem:[#allocation4 + $0x148] sm:$0xff]
    %v128 = vld [vmem:[#allocation4 + $0x150] sm:$0xff]
    %v129 = vld [vmem:[#allocation4 + $0x158] sm:$0xff]
    %v130 = vld [vmem:[#allocation4 + $0x160] sm:$0xff]
    %v131 = vld [vmem:[#allocation4 + $0x168] sm:$0xff]
    %v132 = vld [vmem:[#allocation4 + $0x170] sm:$0xff]
    %v133 = vld [vmem:[#allocation4 + $0x178] sm:$0xff]
    %v134 = vld [vmem:[#allocation4 + $0x180] sm:$0xff]
    %v135 = vld [vmem:[#allocation4 + $0x188] sm:$0xff]
    %v136 = vld [vmem:[#allocation4 + $0x190] sm:$0xff]
    %v137 = vld [vmem:[#allocation4 + $0x198] sm:$0xff]
    %v138 = vld [vmem:[#allocation4 + $0x1a0] sm:$0xff]
    %v139 = vld [vmem:[#allocation4 + $0x1a8] sm:$0xff]
    %v140 = vld [vmem:[#allocation4 + $0x1b0] sm:$0xff]
    %v141 = vld [vmem:[#allocation4 + $0x1b8] sm:$0xff]
    %v142 = vld [vmem:[#allocation4 + $0x1c0] sm:$0xff]
    %v143 = vld [vmem:[#allocation4 + $0x1c8] sm:$0xff]
    %v144 = vld [vmem:[#allocation4 + $0x1d0] sm:$0xff]
    %v145 = vld [vmem:[#allocation4 + $0x1d8] sm:$0xff]
    %v146 = vld [vmem:[#allocation4 + $0x1e0] sm:$0xff]
    %v147 = vld [vmem:[#allocation4 + $0x1e8] sm:$0xff]
    %v148 = vld [vmem:[#allocation4 + $0x1f0] sm:$0xff]
    %v149 = vld [vmem:[#allocation4 + $0x1f8] sm:$0xff]
    %v150 = vld [vmem:[#allocation4 + $0x200] sm:$0xff]
    %v151 = vld [vmem:[#allocation4 + $0x208] sm:$0xff]
    %v152 = vld [vmem:[#allocation4 + $0x210] sm:$0xff]
    %v153 = vld [vmem:[#allocation4 + $0x218] sm:$0xff]
    %v154 = vld [vmem:[#allocation4 + $0x220] sm:$0xff]
    %v155 = vld [vmem:[#allocation4 + $0x228] sm:$0xff]
    %v156 = vld [vmem:[#allocation4 + $0x230] sm:$0xff]
    %v157 = vld [vmem:[#allocation4 + $0x238] sm:$0xff]
    %v158 = vld [vmem:[#allocation4 + $0x240] sm:$0xff]
    %v159 = vld [vmem:[#allocation4 + $0x248] sm:$0xff]
    %v160 = vld [vmem:[#allocation4 + $0x250] sm:$0xff]
    %v161 = vld [vmem:[#allocation4 + $0x258] sm:$0xff]
    %v162 = vld [vmem:[#allocation4 + $0x260] sm:$0xff]
    %v163 = vld [vmem:[#allocation4 + $0x268] sm:$0xff]
    %v164 = vld [vmem:[#allocation4 + $0x270] sm:$0xff]
    %v165 = vld [vmem:[#allocation4 + $0x278] sm:$0xff]
    %v166 = vld [vmem:[#allocation4 + $0x280] sm:$0xff]
    %v167 = vld [vmem:[#allocation4 + $0x288] sm:$0xff]
    %v168 = vld [vmem:[#allocation4 + $0x290] sm:$0xff]
    %v169 = vld [vmem:[#allocation4 + $0x298] sm:$0xff]
    %v170 = vld [vmem:[#allocation4 + $0x2a0] sm:$0xff]
    %v171 = vld [vmem:[#allocation4 + $0x2a8] sm:$0xff]
    %v172 = vld [vmem:[#allocation4 + $0x2b0] sm:$0xff]
    %v173 = vld [vmem:[#allocation4 + $0x2b8] sm:$0xff]
    %v174 = vld [vmem:[#allocation4 + $0x2c0] sm:$0xff]
    %v175 = vld [vmem:[#allocation4 + $0x2c8] sm:$0xff]
    %v176 = vld [vmem:[#allocation4 + $0x2d0] sm:$0xff]
    %v177 = vld [vmem:[#allocation4 + $0x2d8] sm:$0xff]
    %v178 = vld [vmem:[#allocation4 + $0x2e0] sm:$0xff]
    %v179 = vld [vmem:[#allocation4 + $0x2e8] sm:$0xff]
    %v180 = vld [vmem:[#allocation4 + $0x2f0] sm:$0xff]
    %v181 = vld [vmem:[#allocation4 + $0x2f8] sm:$0xff]
    %v182 = vld [vmem:[%s2] sm:$0x3]
    %v184 = vlaneseq
    %v185 = vshrl.u32 %v184, 7
    %v186 = vsub.s32 0, %v185
    %v187 = vrot.slane %v182, %v186
    %v188 = vlaneseq
    %v189 = vshrl.u32 %v188, 7
    %v190 = vsub.s32 1, %v189
    %v191 = vrot.slane %v182, %v190
    %194 = vmatprep.subr.mxu0 %v117
    %195 = vmatpush1.msra.mxu0 %v116
    %196 = vmatprep.subr.mxu0 %v115
    %197 = vmatpush1.msra.mxu0 %v114
    %198 = vmatprep.subr.mxu0 %v113
    %199 = vmatpush1.msra.mxu0 %v112
    %200 = vmatprep.subr.mxu0 %v111
    %201 = vmatpush1.msra.mxu0 %v110
    %202 = vmatprep.subr.mxu0 %v109
    %203 = vmatpush1.msra.mxu0 %v108
    %204 = vmatprep.subr.mxu0 %v107
    %205 = vmatpush1.msra.mxu0 %v106
    %206 = vmatprep.subr.mxu0 %v105
    %207 = vmatpush1.msra.mxu0 %v104
    %208 = vmatprep.subr.mxu0 %v103
    %209 = vmatpush1.msra.mxu0 %v102
    %210 = vmatprep.subr.mxu0 %v101
    %211 = vmatpush1.msra.mxu0 %v100
    %212 = vmatprep.subr.mxu0 %v99
    %213 = vmatpush1.msra.mxu0 %v98
    %214 = vmatprep.subr.mxu0 %v97
    %215 = vmatpush1.msra.mxu0 %v96
    %216 = vmatprep.subr.mxu0 %v95
    %217 = vmatpush1.msra.mxu0 %v94
    %218 = vmatprep.subr.mxu0 %v93
    %219 = vmatpush1.msra.mxu0 %v92
    %220 = vmatprep.subr.mxu0 %v91
    %221 = vmatpush1.msra.mxu0 %v90
    %222 = vmatprep.subr.mxu0 %v89
    %223 = vmatpush1.msra.mxu0 %v88
    %224 = vmatprep.subr.mxu0 %v87
    %225 = vmatpush1.msra.mxu0 %v86
    %226 = vmatprep.subr.mxu0 %v149
    %227 = vmatpush2.msra.mxu0 %v148
    %228 = vmatprep.subr.mxu0 %v147
    %229 = vmatpush2.msra.mxu0 %v146
    %230 = vmatprep.subr.mxu0 %v145
    %231 = vmatpush2.msra.mxu0 %v144
    %232 = vmatprep.subr.mxu0 %v143
    %233 = vmatpush2.msra.mxu0 %v142
    %234 = vmatprep.subr.mxu0 %v141
    %235 = vmatpush2.msra.mxu0 %v140
    %236 = vmatprep.subr.mxu0 %v139
    %237 = vmatpush2.msra.mxu0 %v138
    %238 = vmatprep.subr.mxu0 %v137
    %239 = vmatpush2.msra.mxu0 %v136
    %240 = vmatprep.subr.mxu0 %v135
    %241 = vmatpush2.msra.mxu0 %v134
    %242 = vmatprep.subr.mxu0 %v133
    %243 = vmatpush2.msra.mxu0 %v132
    %244 = vmatprep.subr.mxu0 %v131
    %245 = vmatpush2.msra.mxu0 %v130
    %246 = vmatprep.subr.mxu0 %v129
    %247 = vmatpush2.msra.mxu0 %v128
    %248 = vmatprep.subr.mxu0 %v127
    %249 = vmatpush2.msra.mxu0 %v126
    %250 = vmatprep.subr.mxu0 %v125
    %251 = vmatpush2.msra.mxu0 %v124
    %252 = vmatprep.subr.mxu0 %v123
    %253 = vmatpush2.msra.mxu0 %v122
    %254 = vmatprep.subr.mxu0 %v121
    %255 = vmatpush2.msra.mxu0 %v120
    %256 = vmatprep.subr.mxu0 %v119
    %257 = vmatpush2.msra.mxu0 %v118
    %258 = vmatprep.mubr.f32.mxu0 %v57
    %259 = vmatmul.mubr.f32.gmra.mxu0 %v48
    %v260 = vpop.f32.mrf.mxu0
    %v261 = vadd.f32 %v187, %v260
    %v262 = vpop.f32.mrf.mxu0
    %v263 = vadd.f32 %v191, %v262
    %264 = vmatprep.mubr.f32.mxu0 %v61
    %265 = vmatmul.mubr.f32.gmra.mxu0 %v49
    %v266 = vpop.f32.mrf.mxu0
    %v267 = vadd.f32 %v187, %v266
    %v268 = vpop.f32.mrf.mxu0
    %v269 = vadd.f32 %v191, %v268
    %270 = vmatprep.mubr.f32.mxu0 %v74
    %271 = vmatmul.mubr.f32.gmra.mxu0 %v50
    %v272 = vpop.f32.mrf.mxu0
    %v273 = vadd.f32 %v187, %v272
    %v274 = vpop.f32.mrf.mxu0
    %v275 = vadd.f32 %v191, %v274
    %276 = vmatprep.mubr.f32.mxu0 %v78
    %277 = vmatmul.mubr.f32.gmra.mxu0 %v51
    %v278 = vpop.f32.mrf.mxu0
    %v279 = vadd.f32 %v187, %v278
    %v280 = vpop.f32.mrf.mxu0
    %v281 = vadd.f32 %v191, %v280
    %282 = vdwg.mxu0
    %283 = vmatprep.subr.mxu0 %v181
    %284 = vmatpush1.msra.mxu0 %v180
    %285 = vmatprep.subr.mxu0 %v179
    %286 = vmatpush1.msra.mxu0 %v178
    %287 = vmatprep.subr.mxu0 %v177
    %288 = vmatpush1.msra.mxu0 %v176
    %289 = vmatprep.subr.mxu0 %v175
    %290 = vmatpush1.msra.mxu0 %v174
    %291 = vmatprep.subr.mxu0 %v173
    %292 = vmatpush1.msra.mxu0 %v172
    %293 = vmatprep.subr.mxu0 %v171
    %294 = vmatpush1.msra.mxu0 %v170
    %295 = vmatprep.subr.mxu0 %v169
    %296 = vmatpush1.msra.mxu0 %v168
    %297 = vmatprep.subr.mxu0 %v167
    %298 = vmatpush1.msra.mxu0 %v166
    %299 = vmatprep.subr.mxu0 %v165
    %300 = vmatpush1.msra.mxu0 %v164
    %301 = vmatprep.subr.mxu0 %v163
    %302 = vmatpush1.msra.mxu0 %v162
    %303 = vmatprep.subr.mxu0 %v161
    %304 = vmatpush1.msra.mxu0 %v160
    %305 = vmatprep.subr.mxu0 %v159
    %306 = vmatpush1.msra.mxu0 %v158
    %307 = vmatprep.subr.mxu0 %v157
    %308 = vmatpush1.msra.mxu0 %v156
    %309 = vmatprep.subr.mxu0 %v155
    %310 = vmatpush1.msra.mxu0 %v154
    %311 = vmatprep.subr.mxu0 %v153
    %312 = vmatpush1.msra.mxu0 %v152
    %313 = vmatprep.subr.mxu0 %v151
    %314 = vmatpush1.msra.mxu0 %v150
    %315 = vmatprep.subr.mxu0 0.0
    %316 = vmatpush2.msra.mxu0 0.0
    %317 = vmatprep.subr.mxu0 0.0
    %318 = vmatpush2.msra.mxu0 0.0
    %319 = vmatprep.subr.mxu0 0.0
    %320 = vmatpush2.msra.mxu0 0.0
    %321 = vmatprep.subr.mxu0 0.0
    %322 = vmatpush2.msra.mxu0 0.0
    %323 = vmatprep.subr.mxu0 0.0
    %324 = vmatpush2.msra.mxu0 0.0
    %325 = vmatprep.subr.mxu0 0.0
    %326 = vmatpush2.msra.mxu0 0.0
    %327 = vmatprep.subr.mxu0 0.0
    %328 = vmatpush2.msra.mxu0 0.0
    %329 = vmatprep.subr.mxu0 0.0
    %330 = vmatpush2.msra.mxu0 0.0
    %331 = vmatprep.subr.mxu0 0.0
    %332 = vmatpush2.msra.mxu0 0.0
    %333 = vmatprep.subr.mxu0 0.0
    %334 = vmatpush2.msra.mxu0 0.0
    %335 = vmatprep.subr.mxu0 0.0
    %336 = vmatpush2.msra.mxu0 0.0
    %337 = vmatprep.subr.mxu0 0.0
    %338 = vmatpush2.msra.mxu0 0.0
    %339 = vmatprep.subr.mxu0 0.0
    %340 = vmatpush2.msra.mxu0 0.0
    %341 = vmatprep.subr.mxu0 0.0
    %342 = vmatpush2.msra.mxu0 0.0
    %343 = vmatprep.subr.mxu0 0.0
    %344 = vmatpush2.msra.mxu0 0.0
    %345 = vmatprep.subr.mxu0 0.0
    %346 = vmatpush2.msra.mxu0 0.0
    %347 = vmatprep.mubr.f32.mxu0 0.0
    %348 = vmatmul.mubr.f32.gmra.mxu0 %v65
    %v349 = vpop.f32.mrf.mxu0
    %v350 = vadd.f32 %v261, %v349
    %v351 = vpop.f32.mrf.mxu0
    %v352 = vadd.f32 %v263, %v351
    %353 = vmatprep.mubr.f32.mxu0 0.0
    %354 = vmatmul.mubr.f32.gmra.mxu0 %v69
    %v355 = vpop.f32.mrf.mxu0
    %v356 = vadd.f32 %v267, %v355
    %v357 = vpop.f32.mrf.mxu0
    %v358 = vadd.f32 %v269, %v357
    %359 = vmatprep.mubr.f32.mxu0 0.0
    %360 = vmatmul.mubr.f32.gmra.mxu0 %v81
    %v361 = vpop.f32.mrf.mxu0
    %v362 = vadd.f32 %v273, %v361
    %v363 = vpop.f32.mrf.mxu0
    %v364 = vadd.f32 %v275, %v363
    %365 = vmatprep.mubr.f32.mxu0 0.0
    %366 = vmatmul.mubr.f32.gmra.mxu0 %v85
    %v367 = vpop.f32.mrf.mxu0
    %v368 = vadd.f32 %v279, %v367
    %v369 = vpop.f32.mrf.mxu0
    %v370 = vadd.f32 %v281, %v369
    %371 = vdwg.mxu0
    %v372 = vadd.f32 %v350, %v65
    %v373 = vadd.f32 %v356, %v69
    %v374 = vadd.f32 %v362, %v81
    %v375 = vadd.f32 %v368, %v85
    %v376 = vxor.u32 %v352, 2147483648
    %v377 = vxor.u32 %v358, 2147483648
    %v378 = vxor.u32 %v364, 2147483648
    %v379 = vxor.u32 %v370, 2147483648
    %v380 = vmul.f32 %v376, 1.442695
    %v381 = vpow.pop %v380
    %v382 = vmul.f32 %v377, 1.442695
    %v383 = vpow.pop %v382
    %v384 = vmul.f32 %v378, 1.442695
    %v385 = vpow.pop %v384
    %v386 = vmul.f32 %v379, 1.442695
    %v387 = vpow.pop %v386
    %v388 = vadd.f32 %v381, 1.0
    %v389 = vadd.f32 %v383, 1.0
    %v390 = vadd.f32 %v385, 1.0
    %v391 = vadd.f32 %v387, 1.0
    %v392 = vrcp.pop %v388
    %v393 = vmul.f32 1.0, %v392
    %v394 = vrcp.pop %v389
    %v395 = vmul.f32 1.0, %v394
    %v396 = vrcp.pop %v390
    %v397 = vmul.f32 1.0, %v396
    %v398 = vrcp.pop %v391
    %v399 = vmul.f32 1.0, %v398
    %v400 = vmul.f32 %v372, %v393
    %v401 = vmul.f32 %v373, %v395
    %v402 = vmul.f32 %v374, %v397
    %v403 = vmul.f32 %v375, %v399
    %v404 = vadd.f32 %v400, %v65
    %v405 = vadd.f32 %v401, %v69
    %v406 = vadd.f32 %v402, %v81
    %v407 = vadd.f32 %v403, %v85
    %408 = vadd.xlane.f32.xlu0 %v404
    %v409 = vpop.xlane.xlu0 %408
    %410 = vadd.xlane.f32.xlu0 %v405
    %v411 = vpop.xlane.xlu0 %410
    %412 = vadd.xlane.f32.xlu0 %v406
    %v413 = vpop.xlane.xlu0 %412
    %414 = vadd.xlane.f32.xlu0 %v407
    %v415 = vpop.xlane.xlu0 %414
    %v416 = vmul.f32 %v409, 0.0078125
    %v417 = vmul.f32 %v411, 0.0078125
    %v418 = vmul.f32 %v413, 0.0078125
    %v419 = vmul.f32 %v415, 0.0078125
    %v420 = vsub.f32 %v404, %v416
    %v421 = vsub.f32 %v405, %v417
    %v422 = vsub.f32 %v406, %v418
    %v423 = vsub.f32 %v407, %v419
    %v424 = vmul.f32 %v420, %v420
    %v425 = vmul.f32 %v421, %v421
    %v426 = vmul.f32 %v422, %v422
    %v427 = vmul.f32 %v423, %v423
    %428 = vadd.xlane.f32.xlu0 %v424
    %v429 = vpop.xlane.xlu0 %428
    %430 = vadd.xlane.f32.xlu0 %v425
    %v431 = vpop.xlane.xlu0 %430
    %432 = vadd.xlane.f32.xlu0 %v426
    %v433 = vpop.xlane.xlu0 %432
    %434 = vadd.xlane.f32.xlu0 %v427
    %v435 = vpop.xlane.xlu0 %434
    %v436 = vmul.f32 %v429, 0.0078125
    %v437 = vmul.f32 %v431, 0.0078125
    %v438 = vmul.f32 %v433, 0.0078125
    %v439 = vmul.f32 %v435, 0.0078125
    %v440 = vadd.f32 %v436, 1e-05
    %v441 = vadd.f32 %v437, 1e-05
    %v442 = vadd.f32 %v438, 1e-05
    %v443 = vadd.f32 %v439, 1e-05
    %v444 = vrsqrt.pop %v440
    %v445 = vrsqrt.pop %v441
    %v446 = vrsqrt.pop %v442
    %v447 = vrsqrt.pop %v443
    %v448 = vmul.f32 %v420, %v444
    %v449 = vmul.f32 %v421, %v445
    %v450 = vmul.f32 %v422, %v446
    %v451 = vmul.f32 %v423, %v447
    %v452 = vld [vmem:[%s3] sm:$0x1]
    %v454 = vlaneseq
    %v455 = vshrl.u32 %v454, 7
    %v456 = vsub.s32 0, %v455
    %v457 = vrot.slane %v452, %v456
    %v459 = vmul.f32 %v448, %v457
    %v460 = vmul.f32 %v449, %v457
    %v461 = vmul.f32 %v450, %v457
    %v462 = vmul.f32 %v451, %v457
    %v463 = vld [vmem:[%s4] sm:$0x1]
    %v465 = vlaneseq
    %v466 = vshrl.u32 %v465, 7
    %v467 = vsub.s32 0, %v466
    %v468 = vrot.slane %v463, %v467
    %v470 = vadd.f32 %v459, %v468
    %v471 = vadd.f32 %v460, %v468
    %v472 = vadd.f32 %v461, %v468
    %v473 = vadd.f32 %v462, %v468
    %474 = vst [vmem:[%s5] sm:$0xff] %v470
    %475 = vst [vmem:[%s5 + $0x8] sm:$0x3f] %v471
    %s476 = scalar_lea.vmem %s5, 16
    %477 = vst [vmem:[%s476] sm:$0xff] %v472
    %478 = vst [vmem:[%s476 + $0x8] sm:$0x3f] %v473
    // Predicated region
    $region30: #{gated_causal_cnn_lane_dense.1} parent=1 // pred_check
      _
    $region31: #{gated_causal_cnn_lane_dense.1} parent=1 // pred_check_branch
      %480 = sbr.rel (0) target = $region33
    $region32: #{gated_causal_cnn_lane_dense.1} parent=1 // pred_region
      _
    $region33: #{gated_causal_cnn_lane_dense.1} parent=1 // pred_fallthru
      _
    // Predicated region
    $region34: #{gated_causal_cnn_lane_dense.1} parent=1 // pred_check
      _
    $region35: #{gated_causal_cnn_lane_dense.1} parent=1 // pred_check_branch
      %482 = sbr.rel (0) target = $region37
    $region36: #{gated_causal_cnn_lane_dense.1} parent=1 // pred_region
      _
    $region37: #{gated_causal_cnn_lane_dense.1} parent=1 // pred_fallthru
      _
    %483 = vsyncpa [#allocation3], 1
    %484 = vsyncpa [#allocation5], 1

</llo_original>
